<compile_context>
chip_gen: v6e
topology: v6e:2x2x1
jax: 0.10.0
libtpu: 0.0.40
codegen_flags: <defaults>
</compile_context>

<pallas_src>
import functools
import math

import jax
import jax.numpy as jnp
from jax.experimental import pallas as pl
from jax.experimental.pallas import tpu as pltpu


def _vmem_limit_bytes():
    """~3/4 of per-core VMEM: ~96 MiB on v5e/v6e (128 MiB), 48 MiB on v7x (64 MiB)."""
    cap = 64 * 1024 * 1024
    try:
        cap = int(pltpu.get_tpu_info().vmem_capacity_bytes)
    except Exception:
        pass
    return int(min(100 * 1024 * 1024, (cap * 3) // 4))


_VMEM_LIMIT = _vmem_limit_bytes()


# ----------------------------------------------------------------------------
# Kernel 1: QKV projection  (nnz, dim) @ (dim, 3*dim) + bias  -> bf16 output
# ----------------------------------------------------------------------------
def _qkv_kernel(x_ref, w_ref, b_ref, o_ref):
    x = x_ref[...].astype(jnp.bfloat16)                      # bf16 MXU inputs
    acc = jnp.dot(x, w_ref[...], preferred_element_type=jnp.float32)
    o_ref[...] = (acc + b_ref[...]).astype(o_ref.dtype)      # f32 bias add, cast to bf16


def qkv_projection(x, w_t_bf16, b_row, *, row_block=512):
    nnz, dim = x.shape
    out_dim = w_t_bf16.shape[1]
    tm = min(row_block, nnz)
    return pl.pallas_call(
        _qkv_kernel,
        out_shape=jax.ShapeDtypeStruct((nnz, out_dim), jnp.bfloat16),
        grid=(pl.cdiv(nnz, tm),),
        in_specs=[
            pl.BlockSpec((tm, dim), lambda i: (i, 0)),        # streamed row tile
            pl.BlockSpec((dim, out_dim), lambda i: (0, 0)),   # VMEM-resident weight (bf16)
            pl.BlockSpec((1, out_dim), lambda i: (0, 0)),     # resident bias
        ],
        out_specs=pl.BlockSpec((tm, out_dim), lambda i: (i, 0)),
        compiler_params=pltpu.CompilerParams(
            dimension_semantics=("parallel",),
            vmem_limit_bytes=_VMEM_LIMIT),
    )(x, w_t_bf16, b_row)


# ----------------------------------------------------------------------------
# Kernel 2: variable-length self-attention, online softmax over KV tiles.
#   qkv_pad: (B, S, 3, H, D) bf16, Q already pre-scaled by 1/sqrt(D).
#   output : (B, S, H*D) bf16 (lane-dense per-token stores).
# ----------------------------------------------------------------------------
def _attn_kernel(seqlens_ref, q_ref, k_ref, v_ref, o_ref, m_sc, l_sc, acc_sc,
                 *, q_block, kv_block):
    b = pl.program_id(0)
    qi = pl.program_id(2)
    kv = pl.program_id(3)
    seqlen = seqlens_ref[b]

    @pl.when(kv == 0)
    def _init():
        m_sc[...] = jnp.full_like(m_sc, -jnp.inf)
        l_sc[...] = jnp.zeros_like(l_sc)
        acc_sc[...] = jnp.zeros_like(acc_sc)

    # Skip KV tiles AND query tiles that are entirely padding for this sequence.
    @pl.when(jnp.logical_and(kv * kv_block < seqlen, qi * q_block < seqlen))
    def _compute():
        q = jnp.swapaxes(q_ref[...], 0, 1)                    # (hpb, tq, D) bf16
        k = jnp.swapaxes(k_ref[...], 0, 1)                    # (hpb, tk, D) bf16
        v = jnp.swapaxes(v_ref[...], 0, 1)                    # (hpb, tk, D) bf16
        s = jnp.einsum("hqd,hkd->hqk", q, k,
                       preferred_element_type=jnp.float32)    # (hpb, tq, tk) f32

        # Additive key-padding bias from a tiny (1,1,tk) iota (broadcast add, no big select).
        key_pos = kv * kv_block + jax.lax.broadcasted_iota(jnp.int32, (1, 1, kv_block), 2)
        s = s + jnp.where(key_pos < seqlen, 0.0, -1e30).astype(s.dtype)

        m_prev = m_sc[...]
        m_new = jnp.maximum(m_prev, jnp.max(s, axis=-1, keepdims=True))
        alpha = jnp.exp(m_prev - m_new)
        p = jnp.exp(s - m_new)
        l_sc[...] = alpha * l_sc[...] + jnp.sum(p, axis=-1, keepdims=True)
        acc_sc[...] = alpha * acc_sc[...] + jnp.einsum(
            "hqk,hkd->hqd", p.astype(v.dtype), v,
            preferred_element_type=jnp.float32)
        m_sc[...] = m_new

    @pl.when(kv == pl.num_programs(3) - 1)
    def _finalize():
        inv_l = pl.reciprocal(jnp.maximum(l_sc[...], 1e-30), approx=True)  # (hpb, tq, 1)
        acc = acc_sc[...] * inv_l                                          # (hpb, tq, D)
        hpb, tq, d = acc.shape
        # Single lane-dense store: (tq, hpb*D) into the (B, S, H*D) output slab.
        o_ref[...] = jnp.swapaxes(acc, 0, 1).reshape(tq, hpb * d).astype(o_ref.dtype)


def masked_attention(qkv_pad, seqlens, *, q_block=128, kv_block=256):
    # qkv_pad: (B, S, 3, H, D) bf16 ;  seqlens: (B,) int32
    B, S, three, H, D = qkv_pad.shape
    assert three == 3
    # Heads per block: full H when small, otherwise 8 (sublane-aligned) if it divides H.
    hpb = H if H <= 8 else (8 if H % 8 == 0 else H)
    n_hg = H // hpb
    tq = min(q_block, S)
    tk = min(kv_block, S)
    n_q = pl.cdiv(S, tq)
    n_kv = pl.cdiv(S, tk)

    def _kv_index(kv, seqlen):
        # Clamp so fully-padded KV tiles reuse the previous tile's DMA (no wasted HBM traffic).
        n_valid = jnp.maximum((seqlen + tk - 1) // tk, 1)
        return jnp.minimum(kv, n_valid - 1)

    q_spec = pl.BlockSpec((None, tq, None, hpb, D),
                          lambda b, hg, qi, kv, sl: (b, qi, 0, hg, 0))
    k_spec = pl.BlockSpec((None, tk, None, hpb, D),
                          lambda b, hg, qi, kv, sl: (b, _kv_index(kv, sl[b]), 1, hg, 0))
    v_spec = pl.BlockSpec((None, tk, None, hpb, D),
                          lambda b, hg, qi, kv, sl: (b, _kv_index(kv, sl[b]), 2, hg, 0))
    out_spec = pl.BlockSpec((None, tq, hpb * D),
                            lambda b, hg, qi, kv, sl: (b, qi, hg))

    return pl.pallas_call(
        functools.partial(_attn_kernel, q_block=tq, kv_block=tk),
        out_shape=jax.ShapeDtypeStruct((B, S, H * D), jnp.bfloat16),
        grid_spec=pltpu.PrefetchScalarGridSpec(
            num_scalar_prefetch=1,
            grid=(B, n_hg, n_q, n_kv),
            in_specs=[q_spec, k_spec, v_spec],
            out_specs=out_spec,
            scratch_shapes=[
                pltpu.VMEM((hpb, tq, 1), jnp.float32),   # running row max
                pltpu.VMEM((hpb, tq, 1), jnp.float32),   # running softmax denom
                pltpu.VMEM((hpb, tq, D), jnp.float32),   # running numerator
            ]),
        compiler_params=pltpu.CompilerParams(
            dimension_semantics=("parallel", "parallel", "parallel", "arbitrary"),
            vmem_limit_bytes=_VMEM_LIMIT),
    )(seqlens, qkv_pad, qkv_pad, qkv_pad)


# ----------------------------------------------------------------------------
# Kernel 3: BertSelfOutput -- dense + residual add + LayerNorm (dropout = 0)
# ----------------------------------------------------------------------------
def _self_output_kernel(ctx_ref, w_ref, b_ref, res_ref, g_ref, beta_ref, o_ref, *, eps):
    h = jnp.dot(ctx_ref[...], w_ref[...],                     # ctx already bf16
                preferred_element_type=jnp.float32)
    x = h + b_ref[...] + res_ref[...]
    # Single-pass LayerNorm statistics (sum + sum of squares).
    mean = jnp.mean(x, axis=-1, keepdims=True)
    mean_sq = jnp.mean(x * x, axis=-1, keepdims=True)
    var = jnp.maximum(mean_sq - mean * mean, 0.0)
    y = (x - mean) * jax.lax.rsqrt(var + eps)
    o_ref[...] = (y * g_ref[...] + beta_ref[...]).astype(o_ref.dtype)


def self_output(ctx, w_t_bf16, b_row, residual, gamma_row, beta_row,
                *, eps=1e-12, row_block=512):
    nnz, dim = ctx.shape
    tm = min(row_block, nnz)
    return pl.pallas_call(
        functools.partial(_self_output_kernel, eps=eps),
        out_shape=jax.ShapeDtypeStruct((nnz, dim), residual.dtype),
        grid=(pl.cdiv(nnz, tm),),
        in_specs=[
            pl.BlockSpec((tm, dim), lambda i: (i, 0)),        # ctx row tile (bf16)
            pl.BlockSpec((dim, dim), lambda i: (0, 0)),       # resident Wo (bf16)
            pl.BlockSpec((1, dim), lambda i: (0, 0)),         # resident bias
            pl.BlockSpec((tm, dim), lambda i: (i, 0)),        # residual row tile
            pl.BlockSpec((1, dim), lambda i: (0, 0)),         # resident gamma
            pl.BlockSpec((1, dim), lambda i: (0, 0)),         # resident beta
        ],
        out_specs=pl.BlockSpec((tm, dim), lambda i: (i, 0)),
        compiler_params=pltpu.CompilerParams(
            dimension_semantics=("parallel",),
            vmem_limit_bytes=_VMEM_LIMIT),
    )(ctx, w_t_bf16, b_row, residual, gamma_row, beta_row)


# ----------------------------------------------------------------------------
# Glue: unpadded <-> padded conversions (plain JAX)
# ----------------------------------------------------------------------------
def pad_tokens(x, cu_seqlens, batch, max_s):
    """(nnz, F) -> (batch, max_s, F), zero padded."""
    seqlens = cu_seqlens[1:] - cu_seqlens[:-1]
    pos = jnp.arange(max_s, dtype=jnp.int32)
    idx = cu_seqlens[:-1][:, None] + pos[None, :]             # (B, S)
    valid = pos[None, :] < seqlens[:, None]                   # (B, S)
    idx = jnp.where(valid, idx, 0)
    padded = jnp.take(x, idx.reshape(-1), axis=0).reshape(batch, max_s, -1)
    return padded * valid[..., None].astype(x.dtype)


def unpad_tokens(padded_flat, cu_seqlens, nnz, max_s):
    """(B*max_s, F) -> (nnz, F) gathering the valid tokens in order."""
    tok = jnp.arange(nnz, dtype=jnp.int32)
    b_of_tok = jnp.searchsorted(cu_seqlens, tok, side="right") - 1
    s_of_tok = tok - cu_seqlens[b_of_tok]
    flat = b_of_tok * max_s + s_of_tok
    return jnp.take(padded_flat, flat, axis=0)


# ----------------------------------------------------------------------------
# Parameter packing (PyTorch nn.Linear layout -> kernel layout)
# ----------------------------------------------------------------------------
def prepare_params(wqkv_w, wqkv_b, wo_w, wo_b, ln_gamma, ln_beta, num_heads):
    """Transpose weights to (in, out), cast to bf16, and fold the attention scale
    1/sqrt(head_dim) into the Q slice of Wqkv (+ its bias)."""
    dim = wo_w.shape[0]
    head_dim = dim // num_heads
    scale = 1.0 / math.sqrt(head_dim)
    q_scale = jnp.concatenate([jnp.full((dim,), scale, jnp.float32),
                               jnp.ones((2 * dim,), jnp.float32)])
    return {
        "wqkv_w_t": (wqkv_w * q_scale[:, None]).T.astype(jnp.bfloat16),  # (dim, 3*dim)
        "wqkv_b": (wqkv_b * q_scale).reshape(1, -1).astype(jnp.float32),
        "wo_w_t": wo_w.T.astype(jnp.bfloat16),                           # (dim, dim)
        "wo_b": wo_b.reshape(1, -1).astype(jnp.float32),
        "ln_gamma": ln_gamma.reshape(1, -1).astype(jnp.float32),
        "ln_beta": ln_beta.reshape(1, -1).astype(jnp.float32),
    }


# ----------------------------------------------------------------------------
# Full module forward
# ----------------------------------------------------------------------------
def bert_flash_attention(params, hidden_states, cu_seqlens, max_s, num_heads,
                         subset_idx=None, *, q_block=128, kv_block=256):
    nnz, dim = hidden_states.shape
    batch = cu_seqlens.shape[0] - 1
    head_dim = dim // num_heads

    # --- BertFlashSelfAttention ---
    qkv = qkv_projection(hidden_states, params["wqkv_w_t"], params["wqkv_b"])  # (nnz, 3*dim) bf16

    # TODO(synk): pad/unpad gathers below are still plain-XLA HBM passes.
    qkv_pad = pad_tokens(qkv, cu_seqlens, batch, max_s)                  # (B, S, 3*dim) bf16
    qkv_pad = qkv_pad.reshape(batch, max_s, 3, num_heads, head_dim)      # free view; no transpose

    seqlens = (cu_seqlens[1:] - cu_seqlens[:-1]).astype(jnp.int32)
    ctx_pad = masked_attention(qkv_pad, seqlens,
                               q_block=q_block, kv_block=kv_block)       # (B, S, dim) bf16

    context = unpad_tokens(ctx_pad.reshape(batch * max_s, dim),
                           cu_seqlens, nnz, max_s)                       # (nnz, dim) bf16

    # --- optional subset gather (IndexFirstAxis) ---
    if subset_idx is not None:
        context = jnp.take(context, subset_idx, axis=0)
        hidden_states = jnp.take(hidden_states, subset_idx, axis=0)

    # --- BertSelfOutput: dense + dropout(0) + LayerNorm(residual) ---
    return self_output(context, params["wo_w_t"], params["wo_b"], hidden_states,
                       params["ln_gamma"], params["ln_beta"])


# ----------------------------------------------------------------------------
# Pure-JAX reference for validation (uses raw PyTorch-layout f32 weights)
# ----------------------------------------------------------------------------
def reference(wqkv_w, wqkv_b, wo_w, wo_b, ln_gamma, ln_beta,
              x, cu_seqlens_host, num_heads, eps=1e-12):
    nnz, dim = x.shape
    head_dim = dim // num_heads
    qkv = x @ wqkv_w.T + wqkv_b
    qkv = qkv.astype(jnp.bfloat16).astype(jnp.float32)   # module's fp16 downcast (bf16 here)
    qkv = qkv.reshape(nnz, 3, num_heads, head_dim)
    outs = []
    for b in range(len(cu_seqlens_host) - 1):
        s0, s1 = int(cu_seqlens_host[b]), int(cu_seqlens_host[b + 1])
        q, k, v = qkv[s0:s1, 0], qkv[s0:s1, 1], qkv[s0:s1, 2]
        s = jnp.einsum("qhd,khd->hqk", q, k) / jnp.sqrt(head_dim)
        p = jax.nn.softmax(s, axis=-1)
        o = jnp.einsum("hqk,khd->qhd", p, v)
        outs.append(o.reshape(s1 - s0, dim))
    ctx = jnp.concatenate(outs, axis=0)
    h = ctx @ wo_w.T + wo_b
    xr = h + x
    mean = xr.mean(-1, keepdims=True)
    var = ((xr - mean) ** 2).mean(-1, keepdims=True)
    y = (xr - mean) / jnp.sqrt(var + eps)
    return y * ln_gamma + ln_beta


# ----------------------------------------------------------------------------
def _run_case(seed, hidden, num_heads, seq_lens, q_block, kv_block):
    batch = len(seq_lens)
    max_s = max(seq_lens)
    nnz = sum(seq_lens)

    cu_seqlens_host = [0]
    for L in seq_lens:
        cu_seqlens_host.append(cu_seqlens_host[-1] + L)
    cu_seqlens = jnp.asarray(cu_seqlens_host, dtype=jnp.int32)

    key = jax.random.PRNGKey(seed)
    k_x, k1, k2, k3, k4, k5, k6 = jax.random.split(key, 7)

    hidden_states = jax.random.normal(k_x, (nnz, hidden), dtype=jnp.float32)

    # PyTorch nn.Linear layout: weight (out_features, in_features), bias (out_features,)
    wqkv_w = jax.random.normal(k1, (3 * hidden, hidden), dtype=jnp.float32) * 0.02
    wqkv_b = jax.random.normal(k2, (3 * hidden,), dtype=jnp.float32) * 0.02
    wo_w = jax.random.normal(k3, (hidden, hidden), dtype=jnp.float32) * 0.02
    wo_b = jax.random.normal(k4, (hidden,), dtype=jnp.float32) * 0.02
    ln_gamma = 1.0 + 0.1 * jax.random.normal(k5, (hidden,), dtype=jnp.float32)
    ln_beta = 0.1 * jax.random.normal(k6, (hidden,), dtype=jnp.float32)

    params = prepare_params(wqkv_w, wqkv_b, wo_w, wo_b, ln_gamma, ln_beta, num_heads)

    out = bert_flash_attention(params, hidden_states, cu_seqlens, max_s,
                               num_heads, subset_idx=None,
                               q_block=q_block, kv_block=kv_block)
    out = jax.block_until_ready(out)

    ref = reference(wqkv_w, wqkv_b, wo_w, wo_b, ln_gamma, ln_beta,
                    hidden_states, cu_seqlens_host, num_heads)

    assert out.shape == (nnz, hidden), out.shape
    assert out.dtype == jnp.float32
    max_err = float(jnp.max(jnp.abs(out - ref)))
    # bf16 MXU inputs / bf16 attention output (mirroring the module's fp16 flash-attn cast)
    # and approx reciprocal => relaxed tolerance.
    assert jnp.allclose(out, ref, rtol=2e-2, atol=2e-2), max_err


if __name__ == "__main__":
    # Case 1: single-tile path (hidden=32, heads=4, head_dim=8, batch=2, seqlens 8/6).
    _run_case(seed=0, hidden=32, num_heads=4, seq_lens=[8, 6], q_block=128, kv_block=256)
    # Case 2: multi Q/KV-tile path with padded-tile skipping and KV-index clamping
    # (seqlens 16/7, q_block=kv_block=8 -> 2x2 tiles per sequence).
    _run_case(seed=1, hidden=32, num_heads=4, seq_lens=[16, 7], q_block=8, kv_block=8)
    print("KERNEL_OK")
</pallas_src>

<mosaic_0001>
module attributes {stable_mosaic.version = 11 : i64} {
  func.func @_qkv_kernel(%arg0: i32, %arg1: memref<14x32xf32, #tpu.memory_space<vmem>>, %arg2: memref<32x96xbf16, #tpu.memory_space<vmem>>, %arg3: memref<1x96xf32, #tpu.memory_space<vmem>>, %arg4: memref<14x96xbf16, #tpu.memory_space<vmem>>) attributes {dimension_semantics = [#tpu.dimension_semantics<parallel>], iteration_bounds = array<i64: 1>, scalar_prefetch = 0 : i64, scratch_operands = 0 : i64, tpu.core_type = #tpu.core_type<tc>, window_params = [{transform_indices = @transform_0, window_bounds = array<i64: 14, 32>}, {pipeline_mode = #tpu.pipeline_mode<synchronous>, transform_indices = @transform_1, window_bounds = array<i64: 32, 96>}, {pipeline_mode = #tpu.pipeline_mode<synchronous>, transform_indices = @transform_2, window_bounds = array<i64: 1, 96>}, {transform_indices = @transform_3, window_bounds = array<i64: 14, 96>}]} {
    %c0 = arith.constant 0 : index
    %c0_0 = arith.constant 0 : index
    %0 = vector.load %arg1[%c0, %c0_0] : memref<14x32xf32, #tpu.memory_space<vmem>>, vector<14x32xf32>
    %1 = arith.truncf %0 : vector<14x32xf32> to vector<14x32xbf16>
    %c0_1 = arith.constant 0 : index
    %c0_2 = arith.constant 0 : index
    %2 = vector.load %arg2[%c0_1, %c0_2] : memref<32x96xbf16, #tpu.memory_space<vmem>>, vector<32x96xbf16>
    %cst = arith.constant dense<0.000000e+00> : vector<14x96xf32>
    %3 = tpu.matmul %1, %2, %cst {dimension_numbers = #tpu.dot_dimension_numbers<[1], [0], [0], [1], [0, 0, 1, 1], [], []>} : vector<14x32xbf16>, vector<32x96xbf16>, vector<14x96xf32> -> vector<14x96xf32>
    %c0_3 = arith.constant 0 : index
    %c0_4 = arith.constant 0 : index
    %4 = vector.load %arg3[%c0_3, %c0_4] : memref<1x96xf32, #tpu.memory_space<vmem>>, vector<1x96xf32>
    %5 = vector.broadcast %4 : vector<1x96xf32> to vector<14x96xf32>
    %6 = arith.addf %3, %5 : vector<14x96xf32>
    %7 = arith.truncf %6 : vector<14x96xf32> to vector<14x96xbf16>
    %c0_5 = arith.constant 0 : index
    %c0_6 = arith.constant 0 : index
    %8 = vector.load %arg4[%c0_5, %c0_6] : memref<14x96xbf16, #tpu.memory_space<vmem>>, vector<14x96xbf16>
    tpu.vector_store %arg4[%c0_5, %c0_6], %7 {strides = array<i32>} : memref<14x96xbf16, #tpu.memory_space<vmem>>, vector<14x96xbf16>,
    return
  }
  func.func @transform_0(%arg0: i32) -> (i32, i32) {
    %c0_i32 = arith.constant 0 : i32
    %c0_i32_0 = arith.constant 0 : i32
    return %arg0, %c0_i32 : i32, i32
  }
  func.func @transform_1(%arg0: i32) -> (i32, i32) {
    %c0_i32 = arith.constant 0 : i32
    %c0_i32_0 = arith.constant 0 : i32
    %c0_i32_1 = arith.constant 0 : i32
    return %c0_i32, %c0_i32_0 : i32, i32
  }
  func.func @transform_2(%arg0: i32) -> (i32, i32) {
    %c0_i32 = arith.constant 0 : i32
    %c0_i32_0 = arith.constant 0 : i32
    %c0_i32_1 = arith.constant 0 : i32
    return %c0_i32, %c0_i32_0 : i32, i32
  }
  func.func @transform_3(%arg0: i32) -> (i32, i32) {
    %c0_i32 = arith.constant 0 : i32
    %c0_i32_0 = arith.constant 0 : i32
    return %arg0, %c0_i32 : i32, i32
  }
}

</mosaic_0001>

<llo_original>
// kernel: tpu_custom_call.1
$region0: #{tpu_custom_call.1}
  #allocation0 [shape = 'u32[]', space=smem, size = 0x4, offset = 0x4, fixed_abs, tag = 'smem constant byte address 0x4 - core index']
  #allocation1 [shape = 'u32[144,128]{1,0:T(1,128)}', space=vmem, size = 0x12000, scoped, tag = 'internal scratch']
  %s0 = inlined_call_operand.hbm [shape: f32[14,32], index: 0, kind: input, shape index: {}]
  %s1 = inlined_call_operand.hbm [shape: bf16[32,96], index: 1, kind: input, shape index: {}]
  %s2 = inlined_call_operand.vmem [shape: f32[1,96], index: 2, kind: input, shape index: {}]
  %s3 = inlined_call_operand.hbm [shape: bf16[14,96], index: 3, kind: output, shape index: {}]
  %s4 = sld [smem:[#allocation0]]
  $region30: #{tpu_custom_call.1} parent=0
    _
  %s6 = ssub.s32 1, %s4
  %s7 = scalar_select 0, %s6, %s4
  $region1: #{tpu_custom_call.1} parent=0
    #allocation2 [shape = 'u8[8192]{0}', space=vmem, size = 0x2000, scoped, tag = 'input window, operand 0, single buffered']
    #allocation3 [shape = 's32[1]{0}', space=sflag, size = 0x4, scoped, tag = 'scoped memory for tpu_custom_call.1']
    #allocation4 [shape = 's32[1]{0}', space=sflag, size = 0x4, scoped, tag = 'scoped memory for tpu_custom_call.1']
    #allocation5 [shape = 'u8[8192]{0}', space=vmem, size = 0x2000, scoped, tag = 'input window, operand 1, single buffered']
    #allocation6 [shape = 's32[1]{0}', space=sflag, size = 0x4, scoped, tag = 'scoped memory for tpu_custom_call.1']
    #allocation7 [shape = 'u8[4096]{0}', space=vmem, size = 0x1000, scoped, tag = 'output window, operand 0, single buffered']
    %8 = vsyncpa [#allocation3], 0
    %9 = vsyncpa [#allocation6], 0
    %10 = vsyncpa [#allocation4], 0
    // Predicated region
    $region2: #{tpu_custom_call.1} parent=1 // pred_check
      _
    $region3: #{tpu_custom_call.1} parent=1 // pred_check_branch
      %12 = sbr.rel (0) target = $region5
    $region4: #{tpu_custom_call.1} parent=1 // pred_region
      %s14 = ssub.s32 256, 256
      %15 = vsyncadd [#allocation3], %s14
      %s16 = sshll.u32 [#allocation2], 4
      %s17 = int_to_ptr.vmem [resolvable:$true] %s16
      %22 = dma.hbm_to_vmem [thread:$0]  %s0, 256, %s17, [#allocation3], 128, 128, 8
    $region5: #{tpu_custom_call.1} parent=1 // pred_fallthru
      _
    // Predicated region
    $region6: #{tpu_custom_call.1} parent=1 // pred_check
      _
    $region7: #{tpu_custom_call.1} parent=1 // pred_check_branch
      %24 = sbr.rel (0) target = $region9
    $region8: #{tpu_custom_call.1} parent=1 // pred_region
      %s26 = ssub.s32 256, 256
      %27 = vsyncadd [#allocation6], %s26
      %s28 = sshll.u32 [#allocation5], 4
      %s29 = int_to_ptr.vmem [resolvable:$true] %s28
      %34 = dma.hbm_to_vmem [thread:$0]  %s1, 256, %s29, [#allocation6], 64, 64, 4
    $region9: #{tpu_custom_call.1} parent=1 // pred_fallthru
      _
    // Predicated region
    $region10: #{tpu_custom_call.1} parent=1 // pred_check
      _
    $region11: #{tpu_custom_call.1} parent=1 // pred_check_branch
      %36 = sbr.rel (0) target = $region13
    $region12: #{tpu_custom_call.1} parent=1 // pred_region
      _
    $region13: #{tpu_custom_call.1} parent=1 // pred_fallthru
      _
    // Predicated region
    $region14: #{tpu_custom_call.1} parent=1 // pred_check
      _
    $region15: #{tpu_custom_call.1} parent=1 // pred_check_branch
      %38 = sbr.rel (0) target = $region17
    $region16: #{tpu_custom_call.1} parent=1 // pred_region
      %39 = dma.done [#allocation3], 256
    $region17: #{tpu_custom_call.1} parent=1 // pred_fallthru
      _
    // Predicated region
    $region18: #{tpu_custom_call.1} parent=1 // pred_check
      _
    $region19: #{tpu_custom_call.1} parent=1 // pred_check_branch
      %41 = sbr.rel (0) target = $region21
    $region20: #{tpu_custom_call.1} parent=1 // pred_region
      %42 = dma.done [#allocation6], 256
    $region21: #{tpu_custom_call.1} parent=1 // pred_fallthru
      _
    %v44 = vld [vmem:[#allocation2] sm:$0xff]
    %v45 = vld [vmem:[#allocation2 + $0x8] sm:$0x3f]
    %v46 = vpack.c.bf16 %v45, %v44
    %v47 = vld [vmem:[#allocation5] sm:$0xf]
    %v48 = vld [vmem:[#allocation5 + $0x4] sm:$0xf]
    %v49 = vld [vmem:[#allocation5 + $0x8] sm:$0xf]
    %v50 = vld [vmem:[#allocation5 + $0xc] sm:$0xf]
    %v51 = vld [vmem:[%s2] sm:$0x1]
    %v53 = vlaneseq
    %v54 = vshrl.u32 %v53, 7
    %v55 = vsub.s32 0, %v54
    %v56 = vrot.slane %v51, %v55
    %v62 = vunpack.c.l.b16 %v47
    %v63 = vunpack.c.l.b16 %v48
    %v64 = vunpack.c.l.b16 %v49
    %v65 = vunpack.c.l.b16 %v50
    %v66 = vpack.c.b16 %v63, %v62
    %v67 = vpack.c.b16 %v65, %v64
    %vm70 = vcmask 261120
    %v72 = vsel %vm70, %v46, 0
    %74 = vmatprep.subr.bf16.mxu0 0
    %75 = vmatpush1.bf16.msra.mxu0 0
    %76 = vmatprep.subr.bf16.mxu0 0
    %77 = vmatpush1.bf16.msra.mxu0 0
    %78 = vmatprep.subr.bf16.mxu0 0
    %79 = vmatpush1.bf16.msra.mxu0 0
    %80 = vmatprep.subr.bf16.mxu0 0
    %81 = vmatpush1.bf16.msra.mxu0 0
    %82 = vmatprep.subr.bf16.mxu0 0
    %83 = vmatpush1.bf16.msra.mxu0 0
    %84 = vmatprep.subr.bf16.mxu0 0
    %85 = vmatpush1.bf16.msra.mxu0 0
    %86 = vmatprep.subr.bf16.mxu0 0
    %87 = vmatpush1.bf16.msra.mxu0 %v67
    %88 = vmatprep.subr.bf16.mxu0 0
    %89 = vmatpush1.bf16.msra.mxu0 %v66
    %90 = vmatprep.subr.bf16.mxu0 0
    %91 = vmatpush2.bf16.msra.mxu0 0
    %92 = vmatprep.subr.bf16.mxu0 0
    %93 = vmatpush2.bf16.msra.mxu0 0
    %94 = vmatprep.subr.bf16.mxu0 0
    %95 = vmatpush2.bf16.msra.mxu0 0
    %96 = vmatprep.subr.bf16.mxu0 0
    %97 = vmatpush2.bf16.msra.mxu0 0
    %98 = vmatprep.subr.bf16.mxu0 0
    %99 = vmatpush2.bf16.msra.mxu0 0
    %100 = vmatprep.subr.bf16.mxu0 0
    %101 = vmatpush2.bf16.msra.mxu0 0
    %102 = vmatprep.subr.bf16.mxu0 0
    %103 = vmatpush2.bf16.msra.mxu0 0
    %104 = vmatprep.subr.bf16.mxu0 0
    %105 = vmatpush2.bf16.msra.mxu0 0
    %106 = vmatprep.mubr.bf16.mxu0 0
    %107 = vmatmul.mubr.bf16.gmra.mxu0 %v72
    %v108 = vpop.f32.mrf.mxu0
    %v109 = vadd.f32 %v56, %v108
    %v110 = vpop.f32.mrf.mxu0
    %v111 = vpop.f32.mrf.mxu0
    %v112 = vadd.f32 %v56, %v111
    %v113 = vpop.f32.mrf.mxu0
    %114 = vdwg.mxu0
    %v115 = vpack.c.bf16 %v112, %v109
    %v117 = vunpack.c.l.b16 %v115
    %v118 = vunpack.c.h.b16 %v115
    %v119 = vpack.c.b16 %v117, %v117
    %v120 = vpack.c.b16 %v118, %v118
    %vm123 = vcmask 781312
    %124 = vst.msk [vmem:[#allocation7] sm:$0xf] %vm123, %v119
    %vm125 = vcmask 780288
    %126 = vst.msk [vmem:[#allocation7 + $0x4] sm:$0x7] %vm125, %v120
    // Predicated region
    $region22: #{tpu_custom_call.1} parent=1 // pred_check
      _
    $region23: #{tpu_custom_call.1} parent=1 // pred_check_branch
      %128 = sbr.rel (0) target = $region25
    $region24: #{tpu_custom_call.1} parent=1 // pred_region
      %s130 = ssub.s32 128, 128
      %131 = vsyncadd [#allocation4], %s130
      %s132 = sshll.u32 [#allocation7], 4
      %s133 = int_to_ptr.vmem [resolvable:$true] %s132
      %138 = dma.vmem_to_hbm [thread:$0]  %s133, 128, %s3, [#allocation4], 64, 64, 4
    $region25: #{tpu_custom_call.1} parent=1 // pred_fallthru
      _
    // Predicated region
    $region26: #{tpu_custom_call.1} parent=1 // pred_check
      _
    $region27: #{tpu_custom_call.1} parent=1 // pred_check_branch
      %140 = sbr.rel (0) target = $region29
    $region28: #{tpu_custom_call.1} parent=1 // pred_region
      %141 = dma.done [#allocation4], 128
    $region29: #{tpu_custom_call.1} parent=1 // pred_fallthru
      _
    %142 = vsyncpa [#allocation3], 1
    %143 = vsyncpa [#allocation6], 1
    %144 = vsyncpa [#allocation4], 1

</llo_original>
